<compile_context>
chip_gen: v7x
topology: tpu7x:2x2x1
jax: 0.10.0
libtpu: 0.0.40
codegen_flags: <defaults>
</compile_context>

<pallas_src>
import math
import jax
import jax.numpy as jnp
from jax.experimental import pallas as pl
from jax.experimental.pallas import tpu as pltpu


# --------------------------------------------------------------------------- kernel

def _data_embedding_kernel(x_ref, w_ref, pe_ref, o_ref):
    # x_ref: (TL, 3C)  w_ref: (3C, D)  pe_ref: (TL, D)  o_ref: (TL, D)
    y = jnp.dot(x_ref[...], w_ref[...], preferred_element_type=jnp.float32)
    o_ref[...] = (y + pe_ref[...]).astype(o_ref.dtype)


# --------------------------------------------------------------------------- tiling helpers

def _round_up(a, m):
    return (a + m - 1) // m * m


# f32 block-buffer budget; safe on v5e/v6e (128 MiB VMEM) and v7x (64 MiB VMEM).
_VMEM_BLOCK_BUDGET = 24 << 20


def _block_vmem_bytes(tl, c3, d, itemsize=4):
    # double-buffered x, pe, out tiles + double-buffered (small) weight block
    return 2 * tl * (c3 + 2 * d) * itemsize + 2 * c3 * d * itemsize


def _choose_tl(seq_len, c3, d, batch, tl_target):
    tl = _round_up(min(tl_target, _round_up(seq_len, 8)), 8)
    # Shrink until the double-buffered working set fits the VMEM budget.
    while tl > 8 and _block_vmem_bytes(tl, c3, d) > _VMEM_BLOCK_BUDGET:
        tl = _round_up(tl // 2, 8)
    # Keep at least 2 total grid steps so a 2-TC chip (v7x) shards work across both cores.
    while tl > 8 and batch * pl.cdiv(seq_len, tl) < 2:
        tl = _round_up(tl // 2, 8)
    return tl


# --------------------------------------------------------------------------- wrapper

def data_embedding(x, conv_weight, pe_table, *, tl_target=4096, out_dtype=None):
    """x: (B, L, C) float32; conv_weight: (D, C, 3) [PyTorch Conv1d layout];
    pe_table: (max_len, D) float32. Returns (B, L, D) in `out_dtype` (default x.dtype)."""
    B, L, C = x.shape
    D = conv_weight.shape[0]
    max_len = pe_table.shape[0]
    assert L <= max_len, f"sequence length {L} exceeds positional table max_len {max_len}"
    out_dtype = x.dtype if out_dtype is None else out_dtype

    # Repack conv weight (D, C, 3) -> (3C, D): rows [W0.T; W1.T; W2.T]
    w_cat = jnp.concatenate(
        [conv_weight[:, :, 0].T, conv_weight[:, :, 1].T, conv_weight[:, :, 2].T],
        axis=0,
    )  # (3C, D)

    # Circularly-shifted channel concat (tiny L*3C array) built in the wrapper so the kernel
    # is a single matmul + add and seq tiling needs no halo handling. For typical time-series
    # C << D this extra HBM traffic is a few percent of total (store-bound kernel).
    x_prev = jnp.roll(x, 1, axis=1)     # x[(t-1) % L]
    x_next = jnp.roll(x, -1, axis=1)    # x[(t+1) % L]
    x_cat = jnp.concatenate([x_prev, x, x_next], axis=-1)  # (B, L, 3C)

    pe = pe_table[:L, :].astype(jnp.float32)  # (L, D)

    C3 = 3 * C
    TL = _choose_tl(L, C3, D, B, tl_target)
    L_pad = _round_up(L, TL)
    if L_pad != L:
        # Padding must stay AFTER the circular roll/concat (padding first would break the
        # wrap-around rows); padded rows are sliced off below.
        x_cat = jnp.pad(x_cat, ((0, 0), (0, L_pad - L), (0, 0)))
        pe = jnp.pad(pe, ((0, L_pad - L), (0, 0)))
    num_l = L_pad // TL

    # Size the scoped-VMEM request to actual need + headroom; never the full physical VMEM.
    vmem_limit = int(min(48 << 20, max(_block_vmem_bytes(TL, C3, D) + (4 << 20), 16 << 20)))

    out = pl.pallas_call(
        _data_embedding_kernel,
        out_shape=jax.ShapeDtypeStruct((B, L_pad, D), out_dtype),
        grid_spec=pltpu.PrefetchScalarGridSpec(
            num_scalar_prefetch=0,
            # L tiles outer, batch inner -> pe/w block indices constant across the inner loop.
            grid=(num_l, B),
            in_specs=[
                pl.BlockSpec((None, TL, C3), lambda l, b: (b, l, 0)),  # batch dim squeezed
                pl.BlockSpec((C3, D), lambda l, b: (0, 0)),
                pl.BlockSpec((TL, D), lambda l, b: (l, 0)),
            ],
            out_specs=pl.BlockSpec((None, TL, D), lambda l, b: (b, l, 0)),
        ),
        compiler_params=pltpu.CompilerParams(
            dimension_semantics=("parallel", "parallel"),
            vmem_limit_bytes=vmem_limit,
        ),
    )(x_cat, w_cat, pe)

    if L_pad != L:
        out = out[:, :L, :]
    return out


# --------------------------------------------------------------------------- reference / setup

def make_positional_embedding(max_len, d_model):
    position = jnp.arange(max_len, dtype=jnp.float32)[:, None]            # (max_len, 1)
    div_term = jnp.exp(jnp.arange(0, d_model, 2, dtype=jnp.float32)
                       * (-math.log(10000.0) / d_model))                  # (ceil(d/2),)
    pe = jnp.zeros((max_len, d_model), dtype=jnp.float32)
    pe = pe.at[:, 0::2].set(jnp.sin(position * div_term))
    n_cos = d_model // 2                                                   # odd-d_model safe
    pe = pe.at[:, 1::2].set(jnp.cos(position * div_term[:n_cos]))
    return pe


def reference(x, conv_weight, pe_table):
    # pure-JAX reference: circular conv1d via rolls + positional add
    B, L, C = x.shape
    x_prev = jnp.roll(x, 1, axis=1)
    x_next = jnp.roll(x, -1, axis=1)
    y = (jnp.einsum("blc,dc->bld", x_prev, conv_weight[:, :, 0])
         + jnp.einsum("blc,dc->bld", x, conv_weight[:, :, 1])
         + jnp.einsum("blc,dc->bld", x_next, conv_weight[:, :, 2]))
    return y + pe_table[None, :L, :]


if __name__ == "__main__":
    key = jax.random.PRNGKey(0)

    def init_conv_weight(k, d_model, c_in):
        # Conv1d weight (d_model, c_in, 3), kaiming_normal_(fan_in, leaky_relu)
        fan_in = c_in * 3
        gain = math.sqrt(2.0 / (1.0 + 0.01 ** 2))
        std = gain / math.sqrt(fan_in)
        return jax.random.normal(k, (d_model, c_in, 3), dtype=jnp.float32) * std

    k1, k2, k3, k4 = jax.random.split(key, 4)

    # Case 1: tiny shapes, single L tile, lane-dense D (d_model multiple of 128).
    B, L, C_IN, D_MODEL = 2, 8, 4, 128
    x = jax.random.normal(k1, (B, L, C_IN), dtype=jnp.float32)
    conv_w = init_conv_weight(k2, D_MODEL, C_IN)
    pe_table = make_positional_embedding(max_len=5000, d_model=D_MODEL)
    out = jax.block_until_ready(data_embedding(x, conv_w, pe_table))
    ref = reference(x, conv_w, pe_table)
    assert out.shape == (B, L, D_MODEL)
    assert jnp.allclose(out, ref, atol=1e-5, rtol=1e-5)

    # Case 2: L not a tile multiple, B=1 -> exercises padding + TL/grid-step derivation.
    B2, L2, C2, D2 = 1, 100, 7, 256
    x2 = jax.random.normal(k3, (B2, L2, C2), dtype=jnp.float32)
    conv_w2 = init_conv_weight(k4, D2, C2)
    pe_table2 = make_positional_embedding(max_len=5000, d_model=D2)
    out2 = jax.block_until_ready(data_embedding(x2, conv_w2, pe_table2))
    ref2 = reference(x2, conv_w2, pe_table2)
    assert out2.shape == (B2, L2, D2)
    assert jnp.allclose(out2, ref2, atol=1e-5, rtol=1e-5)

    print("KERNEL_OK")
</pallas_src>

<mosaic_0001>
module attributes {stable_mosaic.version = 11 : i64} {
  func.func @_data_embedding_kernel(%arg0: i32, %arg1: i32, %arg2: memref<1x8x12xf32, #tpu.memory_space<vmem>>, %arg3: memref<12x128xf32, #tpu.memory_space<vmem>>, %arg4: memref<8x128xf32, #tpu.memory_space<vmem>>, %arg5: memref<1x8x128xf32, #tpu.memory_space<vmem>>) attributes {dimension_semantics = [#tpu.dimension_semantics<parallel>, #tpu.dimension_semantics<parallel>], iteration_bounds = array<i64: 1, 2>, scalar_prefetch = 0 : i64, scratch_operands = 0 : i64, tpu.core_type = #tpu.core_type<tc>, window_params = [{transform_indices = @transform_0, window_bounds = array<i64: 1, 8, 12>}, {pipeline_mode = #tpu.pipeline_mode<synchronous>, transform_indices = @transform_1, window_bounds = array<i64: 12, 128>}, {transform_indices = @transform_2, window_bounds = array<i64: 8, 128>}, {transform_indices = @transform_3, window_bounds = array<i64: 1, 8, 128>}]} {
    %c0 = arith.constant 0 : index
    %c0_0 = arith.constant 0 : index
    %c0_1 = arith.constant 0 : index
    %0 = vector.load %arg2[%c0, %c0_0, %c0_1] : memref<1x8x12xf32, #tpu.memory_space<vmem>>, vector<1x8x12xf32>
    %1 = vector.shape_cast %0 : vector<1x8x12xf32> to vector<8x12xf32>
    %c0_2 = arith.constant 0 : index
    %c0_3 = arith.constant 0 : index
    %2 = vector.load %arg3[%c0_2, %c0_3] : memref<12x128xf32, #tpu.memory_space<vmem>>, vector<12x128xf32>
    %cst = arith.constant dense<0.000000e+00> : vector<8x128xf32>
    %3 = tpu.matmul %1, %2, %cst {dimension_numbers = #tpu.dot_dimension_numbers<[1], [0], [0], [1], [0, 0, 1, 1], [], []>} : vector<8x12xf32>, vector<12x128xf32>, vector<8x128xf32> -> vector<8x128xf32>
    %c0_4 = arith.constant 0 : index
    %c0_5 = arith.constant 0 : index
    %4 = vector.load %arg4[%c0_4, %c0_5] : memref<8x128xf32, #tpu.memory_space<vmem>>, vector<8x128xf32>
    %5 = arith.addf %3, %4 : vector<8x128xf32>
    %c0_6 = arith.constant 0 : index
    %c0_7 = arith.constant 0 : index
    %c0_8 = arith.constant 0 : index
    %6 = vector.load %arg5[%c0_6, %c0_7, %c0_8] : memref<1x8x128xf32, #tpu.memory_space<vmem>>, vector<1x8x128xf32>
    %7 = vector.shape_cast %6 : vector<1x8x128xf32> to vector<8x128xf32>
    %8 = vector.shape_cast %5 : vector<8x128xf32> to vector<1x8x128xf32>
    tpu.vector_store %arg5[%c0_6, %c0_7, %c0_8], %8 {strides = array<i32>} : memref<1x8x128xf32, #tpu.memory_space<vmem>>, vector<1x8x128xf32>,
    return
  }
  func.func @transform_0(%arg0: i32, %arg1: i32) -> (i32, i32, i32) {
    %c0_i32 = arith.constant 0 : i32
    %c0_i32_0 = arith.constant 0 : i32
    return %arg1, %arg0, %c0_i32 : i32, i32, i32
  }
  func.func @transform_1(%arg0: i32, %arg1: i32) -> (i32, i32) {
    %c0_i32 = arith.constant 0 : i32
    %c0_i32_0 = arith.constant 0 : i32
    %c0_i32_1 = arith.constant 0 : i32
    return %c0_i32, %c0_i32_0 : i32, i32
  }
  func.func @transform_2(%arg0: i32, %arg1: i32) -> (i32, i32) {
    %c0_i32 = arith.constant 0 : i32
    %c0_i32_0 = arith.constant 0 : i32
    return %arg0, %c0_i32 : i32, i32
  }
  func.func @transform_3(%arg0: i32, %arg1: i32) -> (i32, i32, i32) {
    %c0_i32 = arith.constant 0 : i32
    %c0_i32_0 = arith.constant 0 : i32
    return %arg1, %arg0, %c0_i32 : i32, i32, i32
  }
}

</mosaic_0001>

<llo_original>
// kernel: tpu_custom_call.1
$region0: #{tpu_custom_call.1}
  #allocation0 [shape = 'u32[]', space=smem, size = 0x4, offset = 0x4, fixed_abs, tag = 'smem constant byte address 0x4 - core index']
  #allocation1 [shape = 'u32[144,128]{1,0:T(1,128)}', space=vmem, size = 0x12000, scoped, tag = 'internal scratch']
  %s0 = inlined_call_operand.hbm [shape: f32[2,8,12], index: 0, kind: input, shape index: {}]
  %s1 = inlined_call_operand.hbm [shape: f32[12,128], index: 1, kind: input, shape index: {}]
  %s2 = inlined_call_operand.hbm [shape: f32[8,128], index: 2, kind: input, shape index: {}]
  %s3 = inlined_call_operand.hbm [shape: f32[2,8,128], index: 3, kind: output, shape index: {}]
  %s4 = sld [smem:[#allocation0]]
  $region57: #{tpu_custom_call.1} parent=0
    _
  %s6 = ssub.s32 1, %s4
  %s7 = scalar_select 0, %s6, %s4
  $region1: #{tpu_custom_call.1} parent=0
    #allocation2 [shape = 'u8[8192]{0}', space=vmem, size = 0x2000, scoped, tag = 'input window, operand 0']
    #allocation3 [shape = 's32[2]{0}', space=sflag, size = 0x8, scoped, tag = 'scoped memory for tpu_custom_call.1']
    #allocation4 [shape = 's32[2]{0}', space=sflag, size = 0x8, scoped, tag = 'scoped memory for tpu_custom_call.1']
    #allocation5 [shape = 'u8[8192]{0}', space=vmem, size = 0x2000, scoped, tag = 'input window, operand 1, single buffered']
    #allocation6 [shape = 's32[1]{0}', space=sflag, size = 0x4, scoped, tag = 'scoped memory for tpu_custom_call.1']
    #allocation7 [shape = 'u8[4096]{0}', space=vmem, size = 0x1000, scoped, tag = 'input window, operand 2, single buffered']
    #allocation8 [shape = 'u8[8192]{0}', space=vmem, size = 0x2000, scoped, tag = 'output window, operand 0']
    %8 = vsyncpa [#allocation3], 0
    %s9 = scalar_lea.sflag [#allocation3], 1
    %10 = vsyncpa %s9, 0
    %11 = vsyncpa [#allocation6], 0
    %12 = vsyncpa [#allocation4], 0
    %s13 = scalar_lea.sflag [#allocation4], 1
    %14 = vsyncpa %s13, 0
    loop: start=0, step=1, limit=4
    $region2: #{tpu_custom_call.1} parent=1 // loop_pre_header
      _
    $region3: #{tpu_custom_call.1} parent=1 // loop_header
      %s16 = sphi 0, %s20
      %p17 = scmp.ge.s32.totalorder %s16, 4
      %s23 = sphi 0, %s35
      %s24 = sphi 0, %s31
      %s25 = sphi 0, %s23
      %s26 = sphi 0, %s24
      %s27 = sphi 0, %s25
      %s28 = sphi 0, %s26
      %s40 = sphi 0, %s42
      %s43 = sphi 0, %s40
      %s44 = sphi 0, %s43
      %s60 = sphi 0, %s44
      %s64 = sphi 0, %s64
      %s66 = sphi 0, %s64
      %s67 = sphi 0, %s66
      %s81 = sphi 0, %s67
      %s87 = sphi 0, %s89
      %s90 = sphi 0, %s87
      %s91 = sphi 0, %s90
      %s107 = sphi 0, %s91
      %s115 = sphi 0, %s117
      %s118 = sphi 0, %s115
      %s119 = sphi 0, %s118
      %s135 = sphi 0, %s119
    $region4: #{tpu_custom_call.1} parent=1 // loop_header_branch
      %19 = sbr.rel (%p17) target = $region8
    $region5: #{tpu_custom_call.1} parent=1 // loop_body
      %s21 = ssub.s32 %s16, 1
      %s22 = ssub.s32 %s16, 2
      %s29 = sadd.s32 1, %s24
      %p30 = scmp.ge.s32.totalorder %s29, 2
      %s31 = scalar_select %p30, 0, %s29
      %s32 = sadd.s32 1, %s23
      %s33 = scalar_select %p30, %s32, %s23
      %p34 = scmp.ge.s32.totalorder %s33, 1
      %s35 = scalar_select %p34, 0, %s33
      %s36 = ssub.s32 %s24, %s31
      %s37 = ssub.s32 %s23, %s35
      %s38 = sor.u32 %s36, %s37
      %p39 = scmp.eq.s32.totalorder %s38, 0
      %s41 = sadd.s32 %s40, 1
      %s42 = scalar_select %p39, %s40, %s41
      %p45 = pneg %p39
      %p46 = scmp.eq.s32.totalorder %s16, 1
      %p47 = por %p45, %p46
      %p48 = scmp.ne.s32.totalorder %s40, %s43
      %p49 = scmp.eq.s32.totalorder %s16, 0
      %p50 = por %p48, %p49
      %p51 = scmp.ne.s32.totalorder %s40, %s43
      %p52 = scmp.eq.s32.totalorder %s21, 1
      %p53 = por %p51, %p52
      %p54 = scmp.ne.s32.totalorder %s43, %s44
      %p55 = scmp.eq.s32.totalorder %s21, 0
      %p56 = por %p54, %p55
      %p57 = scmp.ne.s32.totalorder %s43, %s44
      %p58 = scmp.eq.s32.totalorder %s22, 1
      %p59 = por %p57, %p58
      %p61 = scmp.ne.s32.totalorder %s44, %s60
      %p62 = scmp.eq.s32.totalorder %s22, 0
      %p63 = por %p61, %p62
      %s65 = sadd.s32 %s64, 1
      %p68 = scmp.eq.s32.totalorder %s16, 1
      %p69 = scmp.ne.s32.totalorder %s64, %s66
      %p70 = scmp.eq.s32.totalorder %s16, 0
      %p71 = por %p69, %p70
      %p72 = scmp.ne.s32.totalorder %s64, %s66
      %p73 = scmp.eq.s32.totalorder %s21, 1
      %p74 = por %p72, %p73
      %p75 = scmp.ne.s32.totalorder %s66, %s67
      %p76 = scmp.eq.s32.totalorder %s21, 0
      %p77 = por %p75, %p76
      %p78 = scmp.ne.s32.totalorder %s66, %s67
      %p79 = scmp.eq.s32.totalorder %s22, 1
      %p80 = por %p78, %p79
      %p82 = scmp.ne.s32.totalorder %s67, %s81
      %p83 = scmp.eq.s32.totalorder %s22, 0
      %p84 = por %p82, %p83
      %s85 = ssub.s32 %s23, %s35
      %p86 = scmp.eq.s32.totalorder %s85, 0
      %s88 = sadd.s32 %s87, 1
      %s89 = scalar_select %p86, %s87, %s88
      %p92 = pneg %p86
      %p93 = scmp.eq.s32.totalorder %s16, 1
      %p94 = por %p92, %p93
      %p95 = scmp.ne.s32.totalorder %s87, %s90
      %p96 = scmp.eq.s32.totalorder %s16, 0
      %p97 = por %p95, %p96
      %p98 = scmp.ne.s32.totalorder %s87, %s90
      %p99 = scmp.eq.s32.totalorder %s21, 1
      %p100 = por %p98, %p99
      %p101 = scmp.ne.s32.totalorder %s90, %s91
      %p102 = scmp.eq.s32.totalorder %s21, 0
      %p103 = por %p101, %p102
      %p104 = scmp.ne.s32.totalorder %s90, %s91
      %p105 = scmp.eq.s32.totalorder %s22, 1
      %p106 = por %p104, %p105
      %p108 = scmp.ne.s32.totalorder %s91, %s107
      %p109 = scmp.eq.s32.totalorder %s22, 0
      %p110 = por %p108, %p109
      %s111 = ssub.s32 %s24, %s31
      %s112 = ssub.s32 %s23, %s35
      %s113 = sor.u32 %s111, %s112
      %p114 = scmp.eq.s32.totalorder %s113, 0
      %s116 = sadd.s32 %s115, 1
      %s117 = scalar_select %p114, %s115, %s116
      %p120 = pneg %p114
      %p121 = scmp.eq.s32.totalorder %s16, 1
      %p122 = por %p120, %p121
      %p123 = scmp.ne.s32.totalorder %s115, %s118
      %p124 = scmp.eq.s32.totalorder %s16, 0
      %p125 = por %p123, %p124
      %p126 = scmp.ne.s32.totalorder %s115, %s118
      %p127 = scmp.eq.s32.totalorder %s21, 1
      %p128 = por %p126, %p127
      %p129 = scmp.ne.s32.totalorder %s118, %s119
      %p130 = scmp.eq.s32.totalorder %s21, 0
      %p131 = por %p129, %p130
      %p132 = scmp.ne.s32.totalorder %s118, %s119
      %p133 = scmp.eq.s32.totalorder %s22, 1
      %p134 = por %p132, %p133
      %p136 = scmp.ne.s32.totalorder %s119, %s135
      %p137 = scmp.eq.s32.totalorder %s22, 0
      %p138 = por %p136, %p137
      %p139 = scmp.le.s32.totalorder 1, %s16
      %p140 = scmp.lt.s32.totalorder %s16, 3
      %p141 = pnand %p139, %p140
      %p142 = pneg %p141
      // Predicated region
      $region9: #{tpu_custom_call.1} parent=5 // pred_check
        _
      $region10: #{tpu_custom_call.1} parent=5 // pred_check_branch
        %144 = sbr.rel (%p141) target = $region12
      $region11: #{tpu_custom_call.1} parent=5 // pred_region
        %s145 = ssub.s32 %s16, 1
        // Predicated region
        $region13: #{tpu_custom_call.1} parent=11 // pred_check
          %p146 = pneg %p77
        $region14: #{tpu_custom_call.1} parent=11 // pred_check_branch
          %148 = sbr.rel (%p146) target = $region16
        $region15: #{tpu_custom_call.1} parent=11 // pred_region
          %s150 = ssub.s32 256, 256
          %151 = vsyncadd [#allocation6], %s150
          %s152 = sshll.u32 [#allocation5], 4
          %s153 = int_to_ptr.vmem [resolvable:$true] %s152
          %158 = dma.hbm_to_vmem [thread:$0]  %s1, 256, %s153, [#allocation6], 128, 128, 8
        $region16: #{tpu_custom_call.1} parent=11 // pred_fallthru
          _
        // Predicated region
        $region17: #{tpu_custom_call.1} parent=11 // pred_check
          %p159 = pneg %p103
        $region18: #{tpu_custom_call.1} parent=11 // pred_check_branch
          %161 = sbr.rel (%p159) target = $region20
        $region19: #{tpu_custom_call.1} parent=11 // pred_region
          %s163 = ssub.s32 128, 128
          %164 = vsyncadd [#allocation6], %s163
          %s165 = smul.addr %s25, 128
          %s166 = scalar_lea.hbm %s2, %s165
          %s168 = sshll.u32 [#allocation7], 4
          %s169 = int_to_ptr.vmem [resolvable:$true] %s168
          %171 = dma.hbm_to_vmem [thread:$0]  %s166, 128, %s169, [#allocation6]
        $region20: #{tpu_custom_call.1} parent=11 // pred_fallthru
          _
      $region12: #{tpu_custom_call.1} parent=5 // pred_fallthru
        _
      %p172 = scmp.lt.s32.totalorder %s16, 2
      // Predicated region
      $region21: #{tpu_custom_call.1} parent=5 // pred_check
        %p173 = pneg %p172
      $region22: #{tpu_custom_call.1} parent=5 // pred_check_branch
        %175 = sbr.rel (%p173) target = $region24
      $region23: #{tpu_custom_call.1} parent=5 // pred_region
        // Predicated region
        $region25: #{tpu_custom_call.1} parent=23 // pred_check
          %p176 = pneg %p50
        $region26: #{tpu_custom_call.1} parent=23 // pred_check_branch
          %178 = sbr.rel (%p176) target = $region28
        $region27: #{tpu_custom_call.1} parent=23 // pred_region
          %s179 = sand.u32 %s40, 1
          %s180 = scalar_lea.sflag [#allocation3], %s179
          %s181 = sand.u32 %s40, 1
          %s182 = smul.addr %s181, 8
          %s183 = scalar_lea.vmem [#allocation2], %s182
          %s185 = ssub.s32 128, 128
          %186 = vsyncadd %s180, %s185
          %s187 = sadd.s32 %s23, %s24
          %s188 = smul.addr %s187, 128
          %s189 = scalar_lea.hbm %s0, %s188
          %s191 = sshll.u32 %s183, 4
          %s192 = int_to_ptr.vmem [resolvable:$true] %s191
          %194 = dma.hbm_to_vmem [thread:$0]  %s189, 128, %s192, %s180
        $region28: #{tpu_custom_call.1} parent=23 // pred_fallthru
          _
      $region24: #{tpu_custom_call.1} parent=5 // pred_fallthru
        _
      %p195 = scmp.le.s32.totalorder 1, %s16
      %p196 = scmp.lt.s32.totalorder %s16, 3
      %p197 = pnand %p195, %p196
      %p198 = pneg %p197
      // Predicated region
      $region29: #{tpu_custom_call.1} parent=5 // pred_check
        _
      $region30: #{tpu_custom_call.1} parent=5 // pred_check_branch
        %200 = sbr.rel (%p197) target = $region32
      $region31: #{tpu_custom_call.1} parent=5 // pred_region
        %s201 = ssub.s32 %s16, 1
        %s202 = sand.u32 %s43, 1
        %s203 = scalar_lea.sflag [#allocation3], %s202
        %s204 = sand.u32 %s43, 1
        %s205 = smul.addr %s204, 8
        %s206 = scalar_lea.vmem [#allocation2], %s205
        // Predicated region
        $region33: #{tpu_custom_call.1} parent=31 // pred_check
          %p207 = pneg %p56
        $region34: #{tpu_custom_call.1} parent=31 // pred_check_branch
          %209 = sbr.rel (%p207) target = $region36
        $region35: #{tpu_custom_call.1} parent=31 // pred_region
          %210 = dma.done %s203, 128
        $region36: #{tpu_custom_call.1} parent=31 // pred_fallthru
          _
        // Predicated region
        $region37: #{tpu_custom_call.1} parent=31 // pred_check
          %p211 = pneg %p77
        $region38: #{tpu_custom_call.1} parent=31 // pred_check_branch
          %213 = sbr.rel (%p211) target = $region40
        $region39: #{tpu_custom_call.1} parent=31 // pred_region
          %214 = dma.done [#allocation6], 256
        $region40: #{tpu_custom_call.1} parent=31 // pred_fallthru
          _
        // Predicated region
        $region41: #{tpu_custom_call.1} parent=31 // pred_check
          %p215 = pneg %p103
        $region42: #{tpu_custom_call.1} parent=31 // pred_check_branch
          %217 = sbr.rel (%p215) target = $region44
        $region43: #{tpu_custom_call.1} parent=31 // pred_region
          %218 = dma.done [#allocation6], 128
        $region44: #{tpu_custom_call.1} parent=31 // pred_fallthru
          _
        %s219 = sand.u32 %s43, 1
        %s220 = scalar_lea.sflag [#allocation3], %s219
        %s221 = sand.u32 %s43, 1
        %s222 = smul.addr %s221, 8
        %s223 = scalar_lea.vmem [#allocation2], %s222
        %p224 = pneg %p56
        %p225 = pneg %p53
        %p226 = pneg %p77
        %p227 = pneg %p74
        %p228 = pneg %p103
        %p229 = pneg %p100
        %p230 = pneg %p131
        %p231 = pneg %p128
        %s232 = sand.u32 %s118, 1
        %s233 = scalar_lea.sflag [#allocation4], %s232
        %s234 = sand.u32 %s118, 1
        %s235 = smul.addr %s234, 8
        %s236 = scalar_lea.vmem [#allocation8], %s235
        %v237 = vld [vmem:[%s206] sm:$0xff]
        %v238 = vld [vmem:[#allocation5] sm:$0xff]
        %v239 = vld [vmem:[#allocation5 + $0x8] sm:$0xf]
        %v240 = vld [vmem:[#allocation7] sm:$0xff]
        %vm241 = vcmask 97280
        %v243 = vsel %vm241, %v237, 0
        %vm245 = vcmask 1043456
        %v247 = vsel %vm245, %v239, 0
        %249 = vmatprep.subr.mxu0 0.0
        %250 = vmatpush1.msra.mxu0 %v238
        %251 = vmatprep.subr.mxu0 0.0
        %252 = vmatpush1.msra.mxu0 %v247
        %253 = vmatprep.subr.mxu0 0.0
        %254 = vmatpush1.msra.mxu0 0.0
        %255 = vmatprep.subr.mxu0 0.0
        %256 = vmatpush1.msra.mxu0 0.0
        %257 = vmatprep.subr.mxu0 0.0
        %258 = vmatpush1.msra.mxu0 0.0
        %259 = vmatprep.subr.mxu0 0.0
        %260 = vmatpush1.msra.mxu0 0.0
        %261 = vmatprep.subr.mxu0 0.0
        %262 = vmatpush1.msra.mxu0 0.0
        %263 = vmatprep.subr.mxu0 0.0
        %264 = vmatpush1.msra.mxu0 0.0
        %265 = vmatprep.subr.mxu0 0.0
        %266 = vmatpush1.msra.mxu0 0.0
        %267 = vmatprep.subr.mxu0 0.0
        %268 = vmatpush1.msra.mxu0 0.0
        %269 = vmatprep.subr.mxu0 0.0
        %270 = vmatpush1.msra.mxu0 0.0
        %271 = vmatprep.subr.mxu0 0.0
        %272 = vmatpush1.msra.mxu0 0.0
        %273 = vmatprep.subr.mxu0 0.0
        %274 = vmatpush1.msra.mxu0 0.0
        %275 = vmatprep.subr.mxu0 0.0
        %276 = vmatpush1.msra.mxu0 0.0
        %277 = vmatprep.subr.mxu0 0.0
        %278 = vmatpush1.msra.mxu0 0.0
        %279 = vmatprep.subr.mxu0 0.0
        %280 = vmatpush1.msra.mxu0 0.0
        %281 = vmatprep.subr.mxu0 0.0
        %282 = vmatpush1.msra.mxu0 0.0
        %283 = vmatprep.subr.mxu0 0.0
        %284 = vmatpush1.msra.mxu0 0.0
        %285 = vmatprep.subr.mxu0 0.0
        %286 = vmatpush1.msra.mxu0 0.0
        %287 = vmatprep.subr.mxu0 0.0
        %288 = vmatpush1.msra.mxu0 0.0
        %289 = vmatprep.subr.mxu0 0.0
        %290 = vmatpush1.msra.mxu0 0.0
        %291 = vmatprep.subr.mxu0 0.0
        %292 = vmatpush1.msra.mxu0 0.0
        %293 = vmatprep.subr.mxu0 0.0
        %294 = vmatpush1.msra.mxu0 0.0
        %295 = vmatprep.subr.mxu0 0.0
        %296 = vmatpush1.msra.mxu0 0.0
        %297 = vmatprep.subr.mxu0 0.0
        %298 = vmatpush1.msra.mxu0 0.0
        %299 = vmatprep.subr.mxu0 0.0
        %300 = vmatpush1.msra.mxu0 0.0
        %301 = vmatprep.subr.mxu0 0.0
        %302 = vmatpush1.msra.mxu0 0.0
        %303 = vmatprep.subr.mxu0 0.0
        %304 = vmatpush1.msra.mxu0 0.0
        %305 = vmatprep.subr.mxu0 0.0
        %306 = vmatpush1.msra.mxu0 0.0
        %307 = vmatprep.subr.mxu0 0.0
        %308 = vmatpush1.msra.mxu0 0.0
        %309 = vmatprep.subr.mxu0 0.0
        %310 = vmatpush1.msra.mxu0 0.0
        %311 = vmatprep.subr.mxu0 0.0
        %312 = vmatpush1.msra.mxu0 0.0
        %313 = vmatprep.mubr.f32.mxu0 0.0
        %314 = vmatmul.mubr.f32.gmra.mrb[0].mxu0 %v243
        %v315 = vpop.f32.mrb[0].mxu0
        %v316 = vadd.f32 %v240, %v315
        %v317 = vpop.f32.mrb[0].mxu0
        %318 = vdwg.mxu0
        %319 = vst [vmem:[%s236] sm:$0xff] %v316
        %s320 = sand.u32 %s118, 1
        %s321 = scalar_lea.sflag [#allocation4], %s320
        %s322 = sand.u32 %s118, 1
        %s323 = smul.addr %s322, 8
        %s324 = scalar_lea.vmem [#allocation8], %s323
        // Predicated region
        $region45: #{tpu_custom_call.1} parent=31 // pred_check
          %p325 = pneg %p128
        $region46: #{tpu_custom_call.1} parent=31 // pred_check_branch
          %327 = sbr.rel (%p325) target = $region48
        $region47: #{tpu_custom_call.1} parent=31 // pred_region
          %s329 = ssub.s32 128, 128
          %330 = vsyncadd %s321, %s329
          %s331 = sadd.s32 %s25, %s26
          %s332 = smul.addr %s331, 128
          %s333 = scalar_lea.hbm %s3, %s332
          %s335 = sshll.u32 %s324, 4
          %s336 = int_to_ptr.vmem [resolvable:$true] %s335
          %338 = dma.vmem_to_hbm [thread:$0]  %s336, 128, %s333, %s321
        $region48: #{tpu_custom_call.1} parent=31 // pred_fallthru
          _
      $region32: #{tpu_custom_call.1} parent=5 // pred_fallthru
        _
      %p339 = scmp.le.s32.totalorder 2, %s16
      // Predicated region
      $region49: #{tpu_custom_call.1} parent=5 // pred_check
        %p340 = pneg %p339
      $region50: #{tpu_custom_call.1} parent=5 // pred_check_branch
        %342 = sbr.rel (%p340) target = $region52
      $region51: #{tpu_custom_call.1} parent=5 // pred_region
        %s343 = ssub.s32 %s16, 2
        // Predicated region
        $region53: #{tpu_custom_call.1} parent=51 // pred_check
          %p344 = pneg %p134
        $region54: #{tpu_custom_call.1} parent=51 // pred_check_branch
          %346 = sbr.rel (%p344) target = $region56
        $region55: #{tpu_custom_call.1} parent=51 // pred_region
          %s347 = sand.u32 %s119, 1
          %s348 = scalar_lea.sflag [#allocation4], %s347
          %s349 = sand.u32 %s119, 1
          %s350 = smul.addr %s349, 8
          %s351 = scalar_lea.vmem [#allocation8], %s350
          %352 = dma.done %s348, 128
        $region56: #{tpu_custom_call.1} parent=51 // pred_fallthru
          _
      $region52: #{tpu_custom_call.1} parent=5 // pred_fallthru
        _
    $region6: #{tpu_custom_call.1} parent=1 // loop_footer
      %s20 = sadd.s32 1, %s16
    $region7: #{tpu_custom_call.1} parent=1 // loop_footer_branch
      %15 = sbr.rel target = $region3
    $region8: #{tpu_custom_call.1} parent=1 // loop_exit
      _
    %353 = vsyncpa [#allocation3], 1
    %s354 = scalar_lea.sflag [#allocation3], 1
    %355 = vsyncpa %s354, 1
    %356 = vsyncpa [#allocation6], 1
    %357 = vsyncpa [#allocation4], 1
    %s358 = scalar_lea.sflag [#allocation4], 1
    %359 = vsyncpa %s358, 1

</llo_original>
